<compile_context>
chip_gen: v7x
topology: tpu7x:2x2x1
jax: 0.10.0
libtpu: 0.0.40
codegen_flags: <defaults>
</compile_context>

<pallas_src>
import functools

import jax
import jax.numpy as jnp
from jax.experimental import pallas as pl
from jax.experimental.pallas import tpu as pltpu


_SLACK_BYTES = 2 << 20          # compiler scratch / misc headroom per call
_FALLBACK_BUDGET = 56 << 20     # conservative (v7x-sized) budget if query fails


@functools.lru_cache(maxsize=None)
def _vmem_budget_bytes() -> int:
    """Usable VMEM budget for this chip generation (capacity minus ~1/8 headroom)."""
    try:
        info = pltpu.get_tpu_info()
        cap = getattr(info, "vmem_capacity_bytes", None)
        if cap is None:
            cap = getattr(info, "vmem_bytes", None)
        if cap:
            return int(cap) - max(int(cap) // 8, 8 << 20)
    except Exception:
        pass
    return _FALLBACK_BUDGET


@functools.lru_cache(maxsize=None)
def _buffered_weights_supported() -> bool:
    """One-shot probe: does BlockSpec(pipeline_mode=pl.Buffered(1)) work here?"""
    if not hasattr(pl, "Buffered"):
        return False
    try:
        def _probe(a_ref, o_ref):
            o_ref[...] = a_ref[...] + 1.0

        out = pl.pallas_call(
            _probe,
            out_shape=jax.ShapeDtypeStruct((16, 128), jnp.float32),
            grid_spec=pltpu.PrefetchScalarGridSpec(
                num_scalar_prefetch=0,
                grid=(2,),
                in_specs=[pl.BlockSpec((8, 128), lambda i: (0, 0),
                                       pipeline_mode=pl.Buffered(1))],
                out_specs=pl.BlockSpec((8, 128), lambda i: (i, 0)),
            ),
            compiler_params=pltpu.CompilerParams(
                dimension_semantics=("arbitrary",)),
        )(jnp.zeros((8, 128), jnp.float32))
        out = jax.block_until_ready(out)
        return bool(jnp.all(out == 1.0))
    except Exception:
        return False


def _const_input_spec(shape):
    """BlockSpec for grid-invariant inputs (weights/biases).

    Their block index never changes, so there is nothing to overlap: single-
    buffer them (halves weight VMEM, matters for large C*H on v7x)."""
    zeros = tuple(0 for _ in shape)
    kwargs = {}
    if _buffered_weights_supported():
        kwargs["pipeline_mode"] = pl.Buffered(1)
    return pl.BlockSpec(shape, lambda *_: zeros, **kwargs)


def _mlp_scale(stats, w1, b1, w2, b2):
    """stats: (C, 2) f32 columns = [avg | max] -> summed-softmax scale (C, 1) f32.

    Both MLP branches share weights, so they run as ONE pair of matmuls on the
    stacked stats matrix (halves MXU pushes / EUP exps / XLU softmax reductions
    vs. two degenerate matvecs).  Weights stay in PyTorch (out, in) layout so
    no transposes are needed."""
    h = jnp.dot(w1, stats, preferred_element_type=jnp.float32) + b1       # (H, 2)
    h = jnp.maximum(h, 0.0)                                               # ReLU
    logits = jnp.dot(w2, h, preferred_element_type=jnp.float32) + b2      # (C, 2)
    # Softmax over the channel axis, independently per column (= per branch).
    logits = logits - jnp.max(logits, axis=0, keepdims=True)
    e = jnp.exp(logits)
    p = e / jnp.sum(e, axis=0, keepdims=True)                             # (C, 2)
    # x_avg_attn * x + x_max_attn * x == (sum of the two attention columns) * x.
    return jnp.sum(p, axis=1, keepdims=True)                              # (C, 1)


# --------------------------------------------------------------------------- #
# Path 1: single pass -- whole (C, L) slab per grid step, 1 read + 1 write.
# --------------------------------------------------------------------------- #
def _single_pass_kernel(x_ref, w1_ref, b1_ref, w2_ref, b2_ref, o_ref):
    xv = x_ref[0]                                                   # (C, L)
    C = xv.shape[0]
    # AdaptiveAvgPool1d(1) / AdaptiveMaxPool1d(1): reduce over L, f32 accumulation
    # (dtype= keeps the widening fused into the reduction, no f32 copy of xv).
    avg = jnp.mean(xv, axis=-1, keepdims=True, dtype=jnp.float32)   # (C, 1)
    mx = jnp.max(xv, axis=-1, keepdims=True).astype(jnp.float32)    # (C, 1)
    col = jax.lax.broadcasted_iota(jnp.int32, (C, 2), 1)
    stats = jnp.where(col == 0, avg, mx)                            # (C, 2) f32
    scale = _mlp_scale(stats, w1_ref[...], b1_ref[...], w2_ref[...], b2_ref[...])
    o_ref[0] = (xv * scale.astype(xv.dtype)).astype(o_ref.dtype)


# --------------------------------------------------------------------------- #
# Path 2 / pass 1: L-tiled pooling + shared MLP -> (B, C, 1) scale.
# --------------------------------------------------------------------------- #
def _pool_kernel(x_ref, w1_ref, b1_ref, w2_ref, b2_ref, scale_ref, acc_ref,
                 *, true_l, tile_l):
    l = pl.program_id(1)
    nl = pl.num_programs(1)
    xv = x_ref[0]                                                   # (C, tile_l)
    col = jax.lax.broadcasted_iota(jnp.int32, acc_ref.shape, 1)     # (C, 2)

    @pl.when(l == 0)
    def _():
        # column 0 accumulates the sum, column 1 the running max.
        acc_ref[...] = jnp.where(col == 0, 0.0, -jnp.inf)

    xf = xv.astype(jnp.float32)
    if true_l % tile_l != 0:
        # Partial last tile: mask so the mean divides by the TRUE L and the
        # max is padded with -inf (do not trust out-of-range block contents).
        pos = l * tile_l + jax.lax.broadcasted_iota(jnp.int32, xv.shape, 1)
        valid = pos < true_l
        part_sum = jnp.sum(jnp.where(valid, xf, 0.0), axis=-1, keepdims=True)
        part_max = jnp.max(jnp.where(valid, xf, -jnp.inf), axis=-1, keepdims=True)
    else:
        part_sum = jnp.sum(xf, axis=-1, keepdims=True)              # (C, 1)
        part_max = jnp.max(xf, axis=-1, keepdims=True)              # (C, 1)
    acc_ref[...] = jnp.where(col == 0,
                             acc_ref[...] + part_sum,
                             jnp.maximum(acc_ref[...], part_max))

    @pl.when(l == nl - 1)
    def _():
        stats = jnp.where(col == 0, acc_ref[...] * (1.0 / true_l), acc_ref[...])
        scale_ref[0] = _mlp_scale(stats, w1_ref[...], b1_ref[...],
                                  w2_ref[...], b2_ref[...])          # (C, 1)


# --------------------------------------------------------------------------- #
# Path 2 / pass 2: L-tiled scale application (both grid axes parallel).
# --------------------------------------------------------------------------- #
def _apply_kernel(x_ref, scale_ref, o_ref):
    xv = x_ref[0]                                                   # (C, tile_l)
    scale = scale_ref[0]                                            # (C, 1) f32
    o_ref[0] = (xv * scale.astype(xv.dtype)).astype(o_ref.dtype)


def avg_max_channel_attention(x, w1, b1, w2, b2, *, force_tiled=False, tile_l=None):
    """x: (B, C, L). w1: (H, C), b1: (H,), w2: (C, H), b2: (C,) (PyTorch Linear layout)."""
    B, C, L = x.shape
    H = w1.shape[0]

    # Keep parameters in their incoming dtype; only reshape biases to columns.
    b1c = b1.reshape(H, 1)
    b2c = b2.reshape(C, 1)

    itemsize = jnp.dtype(x.dtype).itemsize
    blk_bytes = C * L * itemsize
    w_bytes = int(sum(int(a.size) * jnp.dtype(a.dtype).itemsize
                      for a in (w1, b1, w2, b2)))
    w_bufs = 1 if _buffered_weights_supported() else 2
    budget = _vmem_budget_bytes()

    weight_specs = [
        _const_input_spec((H, C)),   # W1 (torch layout)
        _const_input_spec((H, 1)),   # b1 column
        _const_input_spec((C, H)),   # W2 (torch layout)
        _const_input_spec((C, 1)),   # b2 column
    ]

    # Single-pass footprint: in + out slabs, each double-buffered, + weights.
    single_need = 4 * blk_bytes + w_bufs * w_bytes + _SLACK_BYTES

    if not force_tiled and single_need <= budget:
        # ------------------------- single-pass path ------------------------ #
        # NOTE: with only grid=(B,), B=1 leaves one v7x TensorCore idle; the
        # tiled path below restores dual-TC occupancy when it is used.
        cost = pl.CostEstimate(
            flops=int(3 * B * C * L + 8 * B * C * H),
            transcendentals=int(2 * B * C),
            bytes_accessed=int(2 * B * blk_bytes + w_bytes),
        )
        return pl.pallas_call(
            _single_pass_kernel,
            out_shape=jax.ShapeDtypeStruct((B, C, L), x.dtype),
            grid_spec=pltpu.PrefetchScalarGridSpec(
                num_scalar_prefetch=0,
                grid=(B,),
                in_specs=[pl.BlockSpec((1, C, L), lambda b: (b, 0, 0))] + weight_specs,
                out_specs=pl.BlockSpec((1, C, L), lambda b: (b, 0, 0)),
            ),
            compiler_params=pltpu.CompilerParams(
                dimension_semantics=("parallel",),
                vmem_limit_bytes=int(min(max(single_need, 32 << 20), budget))),
            cost_estimate=cost,
        )(x, w1, b1c, w2, b2c)

    # --------------------------- two-pass tiled path ------------------------ #
    if tile_l is None:
        # Apply pass dominates VMEM: (in + out) tiles, each double-buffered.
        avail = budget - w_bufs * w_bytes - _SLACK_BYTES
        t = max(avail // (4 * C * itemsize), 128)
        tile_l = int(max((t // 128) * 128, 128))   # keep stores lane-dense
    if tile_l >= L:
        tile_l = L
    n_l = pl.cdiv(L, tile_l)
    tile_bytes = C * tile_l * itemsize

    pool_need = 2 * tile_bytes + w_bufs * w_bytes + 8 * C * 4 + _SLACK_BYTES
    apply_need = 4 * tile_bytes + 8 * C * 4 + _SLACK_BYTES

    # Pass 1: pooled stats + shared MLP -> per-channel scale (B, C, 1) f32.
    pool_kernel = functools.partial(_pool_kernel, true_l=L, tile_l=tile_l)
    scale = pl.pallas_call(
        pool_kernel,
        out_shape=jax.ShapeDtypeStruct((B, C, 1), jnp.float32),
        grid_spec=pltpu.PrefetchScalarGridSpec(
            num_scalar_prefetch=0,
            grid=(B, n_l),
            in_specs=[pl.BlockSpec((1, C, tile_l), lambda b, l: (b, 0, l))] + weight_specs,
            out_specs=pl.BlockSpec((1, C, 1), lambda b, l: (b, 0, 0)),
            scratch_shapes=[pltpu.VMEM((C, 2), jnp.float32)],
        ),
        compiler_params=pltpu.CompilerParams(
            dimension_semantics=("parallel", "arbitrary"),
            vmem_limit_bytes=int(min(max(pool_need, 32 << 20), budget))),
        cost_estimate=pl.CostEstimate(
            flops=int(2 * B * C * L + 8 * B * C * H),
            transcendentals=int(2 * B * C),
            bytes_accessed=int(B * blk_bytes + w_bytes + B * C * 4)),
    )(x, w1, b1c, w2, b2c)

    # Pass 2: apply the scale, fully parallel over (B, L-tiles).
    return pl.pallas_call(
        _apply_kernel,
        out_shape=jax.ShapeDtypeStruct((B, C, L), x.dtype),
        grid_spec=pltpu.PrefetchScalarGridSpec(
            num_scalar_prefetch=0,
            grid=(B, n_l),
            in_specs=[pl.BlockSpec((1, C, tile_l), lambda b, l: (b, 0, l)),
                      pl.BlockSpec((1, C, 1), lambda b, l: (b, 0, 0))],
            out_specs=pl.BlockSpec((1, C, tile_l), lambda b, l: (b, 0, l)),
        ),
        compiler_params=pltpu.CompilerParams(
            dimension_semantics=("parallel", "parallel"),
            vmem_limit_bytes=int(min(max(apply_need, 32 << 20), budget))),
        cost_estimate=pl.CostEstimate(
            flops=int(B * C * L),
            transcendentals=0,
            bytes_accessed=int(2 * B * blk_bytes + B * C * 4)),
    )(x, scale)


# --------------------------------------------------------------------------- #
# Reference + test harness
# --------------------------------------------------------------------------- #
def _reference(x, w1, b1, w2, b2):
    xf = x.astype(jnp.float32)
    avg = jnp.mean(xf, axis=-1)            # (B, C)
    mx = jnp.max(xf, axis=-1)              # (B, C)

    def mlp(v):                            # v: (B, C)
        h = jnp.maximum(v @ w1.T + b1, 0.0)
        return jax.nn.softmax(h @ w2.T + b2, axis=-1)

    scale = mlp(avg) + mlp(mx)             # (B, C)
    return (scale[:, :, None] * xf).astype(x.dtype)


def _make_params(key, C, H, dtype=jnp.float32):
    # Mimic nn.Linear default init: U(-1/sqrt(fan_in), 1/sqrt(fan_in)).
    k1, k2, k3, k4 = jax.random.split(key, 4)
    bound1 = 1.0 / (C ** 0.5)
    bound2 = 1.0 / (H ** 0.5)
    w1 = jax.random.uniform(k1, (H, C), minval=-bound1, maxval=bound1, dtype=dtype)
    b1 = jax.random.uniform(k2, (H,), minval=-bound1, maxval=bound1, dtype=dtype)
    w2 = jax.random.uniform(k3, (C, H), minval=-bound2, maxval=bound2, dtype=dtype)
    b2 = jax.random.uniform(k4, (C,), minval=-bound2, maxval=bound2, dtype=dtype)
    return w1, b1, w2, b2


if __name__ == "__main__":
    key = jax.random.PRNGKey(0)
    k_a, k_b = jax.random.split(key)

    # 1) Small module-spec shapes -> auto-selected single-pass path.
    B, C, L, ratio = 2, 4, 16, 2
    H = C * ratio
    kx, kp = jax.random.split(k_a)
    x = jax.random.normal(kx, (B, C, L), dtype=jnp.float32)
    w1, b1, w2, b2 = _make_params(kp, C, H)

    out = jax.block_until_ready(avg_max_channel_attention(x, w1, b1, w2, b2))
    ref = _reference(x, w1, b1, w2, b2)
    assert out.shape == (B, C, L)
    assert jnp.allclose(out, ref, atol=1e-5, rtol=1e-5), "single-pass mismatch vs reference"

    # 2) Force the two-pass L-tiled fallback (the v7x small-VMEM path).
    B2, C2, L2, ratio2 = 2, 8, 256, 2
    H2 = C2 * ratio2
    kx2, kp2 = jax.random.split(k_b)
    x2 = jax.random.normal(kx2, (B2, C2, L2), dtype=jnp.float32)
    w1b, b1b, w2b, b2b = _make_params(kp2, C2, H2)

    out2 = jax.block_until_ready(
        avg_max_channel_attention(x2, w1b, b1b, w2b, b2b, force_tiled=True, tile_l=128))
    ref2 = _reference(x2, w1b, b1b, w2b, b2b)
    assert out2.shape == (B2, C2, L2)
    assert jnp.allclose(out2, ref2, atol=1e-5, rtol=1e-5), "tiled-path mismatch vs reference"

    print("KERNEL_OK")
</pallas_src>

<mosaic_0001>
module attributes {stable_mosaic.version = 11 : i64} {
  func.func @_probe(%arg0: i32, %arg1: memref<8x128xf32, #tpu.memory_space<vmem>>, %arg2: memref<8x128xf32, #tpu.memory_space<vmem>>) attributes {dimension_semantics = [#tpu.dimension_semantics<arbitrary>], iteration_bounds = array<i64: 2>, scalar_prefetch = 0 : i64, scratch_operands = 0 : i64, tpu.core_type = #tpu.core_type<tc>, window_params = [{pipeline_mode = #tpu.pipeline_mode<synchronous>, transform_indices = @transform_0, window_bounds = array<i64: 8, 128>}, {transform_indices = @transform_1, window_bounds = array<i64: 8, 128>}]} {
    %c0 = arith.constant 0 : index
    %c0_0 = arith.constant 0 : index
    %0 = vector.load %arg1[%c0, %c0_0] : memref<8x128xf32, #tpu.memory_space<vmem>>, vector<8x128xf32>
    %cst = arith.constant 1.000000e+00 : f32
    %1 = vector.broadcast %cst : f32 to vector<8x128xf32>
    %2 = arith.addf %0, %1 : vector<8x128xf32>
    %c0_1 = arith.constant 0 : index
    %c0_2 = arith.constant 0 : index
    %3 = vector.load %arg2[%c0_1, %c0_2] : memref<8x128xf32, #tpu.memory_space<vmem>>, vector<8x128xf32>
    tpu.vector_store %arg2[%c0_1, %c0_2], %2 {strides = array<i32>} : memref<8x128xf32, #tpu.memory_space<vmem>>, vector<8x128xf32>,
    return
  }
  func.func @transform_0(%arg0: i32) -> (i32, i32) {
    %c0_i32 = arith.constant 0 : i32
    %c0_i32_0 = arith.constant 0 : i32
    %c0_i32_1 = arith.constant 0 : i32
    return %c0_i32, %c0_i32_0 : i32, i32
  }
  func.func @transform_1(%arg0: i32) -> (i32, i32) {
    %c0_i32 = arith.constant 0 : i32
    %c0_i32_0 = arith.constant 0 : i32
    return %arg0, %c0_i32 : i32, i32
  }
}

module attributes {stable_mosaic.version = 11 : i64} {
  func.func @_single_pass_kernel(%arg0: i32, %arg1: memref<1x4x16xf32, #tpu.memory_space<vmem>>, %arg2: memref<8x4xf32, #tpu.memory_space<vmem>>, %arg3: memref<8x1xf32, #tpu.memory_space<vmem>>, %arg4: memref<4x8xf32, #tpu.memory_space<vmem>>, %arg5: memref<4x1xf32, #tpu.memory_space<vmem>>, %arg6: memref<1x4x16xf32, #tpu.memory_space<vmem>>) attributes {dimension_semantics = [#tpu.dimension_semantics<parallel>], iteration_bounds = array<i64: 2>, scalar_prefetch = 0 : i64, scratch_operands = 0 : i64, tpu.core_type = #tpu.core_type<tc>, window_params = [{transform_indices = @transform_0, window_bounds = array<i64: 1, 4, 16>}, {pipeline_mode = #tpu.pipeline_mode<synchronous>, transform_indices = @transform_1, window_bounds = array<i64: 8, 4>}, {pipeline_mode = #tpu.pipeline_mode<synchronous>, transform_indices = @transform_2, window_bounds = array<i64: 8, 1>}, {pipeline_mode = #tpu.pipeline_mode<synchronous>, transform_indices = @transform_3, window_bounds = array<i64: 4, 8>}, {pipeline_mode = #tpu.pipeline_mode<synchronous>, transform_indices = @transform_4, window_bounds = array<i64: 4, 1>}, {transform_indices = @transform_5, window_bounds = array<i64: 1, 4, 16>}]} {
    %c0 = arith.constant 0 : index
    %c0_0 = arith.constant 0 : index
    %c0_1 = arith.constant 0 : index
    %0 = vector.load %arg1[%c0, %c0_0, %c0_1] : memref<1x4x16xf32, #tpu.memory_space<vmem>>, vector<1x4x16xf32>
    %1 = vector.shape_cast %0 : vector<1x4x16xf32> to vector<4x16xf32>
    %cst = arith.constant dense<0.000000e+00> : vector<4xf32>
    %2 = vector.multi_reduction <add>, %1, %cst [1] : vector<4x16xf32> to vector<4xf32>
    %3 = vector.shape_cast %2 : vector<4xf32> to vector<4x1xf32>
    %cst_2 = arith.constant 1.600000e+01 : f32
    %4 = vector.broadcast %cst_2 : f32 to vector<4x1xf32>
    %5 = arith.divf %3, %4 : vector<4x1xf32>
    %cst_3 = arith.constant dense<0xFF800000> : vector<4xf32>
    %6 = vector.multi_reduction <maximumf>, %1, %cst_3 [1] : vector<4x16xf32> to vector<4xf32>
    %7 = vector.shape_cast %6 : vector<4xf32> to vector<4x1xf32>
    %8 = tpu.iota {dimensions = array<i32: 1>} : vector<4x2xi32>
    %c0_i32 = arith.constant 0 : i32
    %9 = vector.broadcast %c0_i32 : i32 to vector<4x2xi32>
    %10 = arith.cmpi eq, %8, %9 : vector<4x2xi32>
    %11 = vector.shape_cast %5 : vector<4x1xf32> to vector<4x1xf32>
    %12 = vector.broadcast %11 : vector<4x1xf32> to vector<4x2xf32>
    %13 = vector.shape_cast %7 : vector<4x1xf32> to vector<4x1xf32>
    %14 = vector.broadcast %13 : vector<4x1xf32> to vector<4x2xf32>
    %15 = arith.select %10, %12, %14 : vector<4x2xi1>, vector<4x2xf32>
    %c0_4 = arith.constant 0 : index
    %c0_5 = arith.constant 0 : index
    %16 = vector.load %arg2[%c0_4, %c0_5] : memref<8x4xf32, #tpu.memory_space<vmem>>, vector<8x4xf32>
    %c0_6 = arith.constant 0 : index
    %c0_7 = arith.constant 0 : index
    %17 = vector.load %arg3[%c0_6, %c0_7] : memref<8x1xf32, #tpu.memory_space<vmem>>, vector<8x1xf32>
    %c0_8 = arith.constant 0 : index
    %c0_9 = arith.constant 0 : index
    %18 = vector.load %arg4[%c0_8, %c0_9] : memref<4x8xf32, #tpu.memory_space<vmem>>, vector<4x8xf32>
    %c0_10 = arith.constant 0 : index
    %c0_11 = arith.constant 0 : index
    %19 = vector.load %arg5[%c0_10, %c0_11] : memref<4x1xf32, #tpu.memory_space<vmem>>, vector<4x1xf32>
    %cst_12 = arith.constant dense<0.000000e+00> : vector<8x2xf32>
    %20 = tpu.matmul %16, %15, %cst_12 {dimension_numbers = #tpu.dot_dimension_numbers<[1], [0], [0], [1], [0, 0, 1, 1], [], []>} : vector<8x4xf32>, vector<4x2xf32>, vector<8x2xf32> -> vector<8x2xf32>
    %21 = vector.broadcast %17 : vector<8x1xf32> to vector<8x2xf32>
    %22 = arith.addf %20, %21 : vector<8x2xf32>
    %cst_13 = arith.constant 0.000000e+00 : f32
    %23 = vector.broadcast %cst_13 : f32 to vector<8x2xf32>
    %24 = arith.maximumf %22, %23 : vector<8x2xf32>
    %cst_14 = arith.constant dense<0.000000e+00> : vector<4x2xf32>
    %25 = tpu.matmul %18, %24, %cst_14 {dimension_numbers = #tpu.dot_dimension_numbers<[1], [0], [0], [1], [0, 0, 1, 1], [], []>} : vector<4x8xf32>, vector<8x2xf32>, vector<4x2xf32> -> vector<4x2xf32>
    %26 = vector.broadcast %19 : vector<4x1xf32> to vector<4x2xf32>
    %27 = arith.addf %25, %26 : vector<4x2xf32>
    %cst_15 = arith.constant dense<0xFF800000> : vector<2xf32>
    %28 = vector.multi_reduction <maximumf>, %27, %cst_15 [0] : vector<4x2xf32> to vector<2xf32>
    %29 = vector.shape_cast %28 : vector<2xf32> to vector<1x2xf32>
    %30 = vector.broadcast %29 : vector<1x2xf32> to vector<4x2xf32>
    %31 = arith.subf %27, %30 : vector<4x2xf32>
    %32 = math.exp %31 : vector<4x2xf32>
    %cst_16 = arith.constant dense<0.000000e+00> : vector<2xf32>
    %33 = vector.multi_reduction <add>, %32, %cst_16 [0] : vector<4x2xf32> to vector<2xf32>
    %34 = vector.shape_cast %33 : vector<2xf32> to vector<1x2xf32>
    %35 = vector.broadcast %34 : vector<1x2xf32> to vector<4x2xf32>
    %36 = arith.divf %32, %35 : vector<4x2xf32>
    %cst_17 = arith.constant dense<0.000000e+00> : vector<4xf32>
    %37 = vector.multi_reduction <add>, %36, %cst_17 [1] : vector<4x2xf32> to vector<4xf32>
    %38 = vector.shape_cast %37 : vector<4xf32> to vector<4x1xf32>
    %39 = vector.broadcast %38 : vector<4x1xf32> to vector<4x16xf32>
    %40 = arith.mulf %1, %39 : vector<4x16xf32>
    %c0_18 = arith.constant 0 : index
    %c0_19 = arith.constant 0 : index
    %c0_20 = arith.constant 0 : index
    %41 = vector.load %arg6[%c0_18, %c0_19, %c0_20] : memref<1x4x16xf32, #tpu.memory_space<vmem>>, vector<1x4x16xf32>
    %42 = vector.shape_cast %41 : vector<1x4x16xf32> to vector<4x16xf32>
    %43 = vector.shape_cast %40 : vector<4x16xf32> to vector<1x4x16xf32>
    tpu.vector_store %arg6[%c0_18, %c0_19, %c0_20], %43 {strides = array<i32>} : memref<1x4x16xf32, #tpu.memory_space<vmem>>, vector<1x4x16xf32>,
    return
  }
  func.func @transform_0(%arg0: i32) -> (i32, i32, i32) {
    %c0_i32 = arith.constant 0 : i32
    %c0_i32_0 = arith.constant 0 : i32
    %c0_i32_1 = arith.constant 0 : i32
    return %arg0, %c0_i32, %c0_i32_0 : i32, i32, i32
  }
  func.func @transform_1(%arg0: i32) -> (i32, i32) {
    %c0_i32 = arith.constant 0 : i32
    %c0_i32_0 = arith.constant 0 : i32
    %c0_i32_1 = arith.constant 0 : i32
    return %c0_i32, %c0_i32_0 : i32, i32
  }
  func.func @transform_2(%arg0: i32) -> (i32, i32) {
    %c0_i32 = arith.constant 0 : i32
    %c0_i32_0 = arith.constant 0 : i32
    %c0_i32_1 = arith.constant 0 : i32
    return %c0_i32, %c0_i32_0 : i32, i32
  }
  func.func @transform_3(%arg0: i32) -> (i32, i32) {
    %c0_i32 = arith.constant 0 : i32
    %c0_i32_0 = arith.constant 0 : i32
    %c0_i32_1 = arith.constant 0 : i32
    return %c0_i32, %c0_i32_0 : i32, i32
  }
  func.func @transform_4(%arg0: i32) -> (i32, i32) {
    %c0_i32 = arith.constant 0 : i32
    %c0_i32_0 = arith.constant 0 : i32
    %c0_i32_1 = arith.constant 0 : i32
    return %c0_i32, %c0_i32_0 : i32, i32
  }
  func.func @transform_5(%arg0: i32) -> (i32, i32, i32) {
    %c0_i32 = arith.constant 0 : i32
    %c0_i32_0 = arith.constant 0 : i32
    %c0_i32_1 = arith.constant 0 : i32
    return %arg0, %c0_i32, %c0_i32_0 : i32, i32, i32
  }
}

</mosaic_0001>

<llo_original>
// kernel: tpu_custom_call.1
$region0: #{tpu_custom_call.1}
  #allocation0 [shape = 'u32[]', space=smem, size = 0x4, offset = 0x4, fixed_abs, tag = 'smem constant byte address 0x4 - core index']
  #allocation1 [shape = 'u32[144,128]{1,0:T(1,128)}', space=vmem, size = 0x12000, scoped, tag = 'internal scratch']
  %s0 = inlined_call_operand.hbm [shape: f32[8,128], index: 0, kind: input, shape index: {}]
  %s1 = inlined_call_operand.hbm [shape: f32[16,128], index: 1, kind: output, shape index: {}]
  %s2 = sld [smem:[#allocation0]]
  $region41: #{tpu_custom_call.1} parent=0
    _
  %s4 = ssub.s32 1, %s2
  %s5 = scalar_select 0, %s4, %s2
  $region1: #{tpu_custom_call.1} parent=0
    #allocation2 [shape = 'u8[4096]{0}', space=vmem, size = 0x1000, scoped, tag = 'input window, operand 0, single buffered']
    #allocation3 [shape = 's32[2]{0}', space=sflag, size = 0x8, scoped, tag = 'scoped memory for tpu_custom_call.1']
    #allocation4 [shape = 's32[2]{0}', space=sflag, size = 0x8, scoped, tag = 'scoped memory for tpu_custom_call.1']
    #allocation5 [shape = 'u8[8192]{0}', space=vmem, size = 0x2000, scoped, tag = 'output window, operand 0']
    %6 = vsyncpa [#allocation3], 0
    %7 = vsyncpa [#allocation4], 0
    %s8 = scalar_lea.sflag [#allocation4], 1
    %9 = vsyncpa %s8, 0
    loop: start=0, step=1, limit=4
    $region2: #{tpu_custom_call.1} parent=1 // loop_pre_header
      _
    $region3: #{tpu_custom_call.1} parent=1 // loop_header
      %s11 = sphi 0, %s15
      %p12 = scmp.ge.s32.totalorder %s11, 4
      %s19 = sphi 0, %s19
      %s21 = sphi 0, %s19
      %s22 = sphi 0, %s21
      %s36 = sphi 0, %s22
      %s42 = sphi 0, %s44
      %s45 = sphi 0, %s42
      %s46 = sphi 0, %s45
      %s62 = sphi 0, %s46
    $region4: #{tpu_custom_call.1} parent=1 // loop_header_branch
      %14 = sbr.rel (%p12) target = $region8
    $region5: #{tpu_custom_call.1} parent=1 // loop_body
      %s16 = ssub.s32 %s11, 1
      %s17 = ssub.s32 %s11, 2
      %s18 = sadd.s32 %s11, 1
      %s20 = sadd.s32 %s19, 1
      %p23 = scmp.eq.s32.totalorder %s11, 1
      %p24 = scmp.ne.s32.totalorder %s19, %s21
      %p25 = scmp.eq.s32.totalorder %s11, 0
      %p26 = por %p24, %p25
      %p27 = scmp.ne.s32.totalorder %s19, %s21
      %p28 = scmp.eq.s32.totalorder %s16, 1
      %p29 = por %p27, %p28
      %p30 = scmp.ne.s32.totalorder %s21, %s22
      %p31 = scmp.eq.s32.totalorder %s16, 0
      %p32 = por %p30, %p31
      %p33 = scmp.ne.s32.totalorder %s21, %s22
      %p34 = scmp.eq.s32.totalorder %s17, 1
      %p35 = por %p33, %p34
      %p37 = scmp.ne.s32.totalorder %s22, %s36
      %p38 = scmp.eq.s32.totalorder %s17, 0
      %p39 = por %p37, %p38
      %s40 = ssub.s32 %s11, %s18
      %p41 = scmp.eq.s32.totalorder %s40, 0
      %s43 = sadd.s32 %s42, 1
      %s44 = scalar_select %p41, %s42, %s43
      %p47 = pneg %p41
      %p48 = scmp.eq.s32.totalorder %s11, 1
      %p49 = por %p47, %p48
      %p50 = scmp.ne.s32.totalorder %s42, %s45
      %p51 = scmp.eq.s32.totalorder %s11, 0
      %p52 = por %p50, %p51
      %p53 = scmp.ne.s32.totalorder %s42, %s45
      %p54 = scmp.eq.s32.totalorder %s16, 1
      %p55 = por %p53, %p54
      %p56 = scmp.ne.s32.totalorder %s45, %s46
      %p57 = scmp.eq.s32.totalorder %s16, 0
      %p58 = por %p56, %p57
      %p59 = scmp.ne.s32.totalorder %s45, %s46
      %p60 = scmp.eq.s32.totalorder %s17, 1
      %p61 = por %p59, %p60
      %p63 = scmp.ne.s32.totalorder %s46, %s62
      %p64 = scmp.eq.s32.totalorder %s17, 0
      %p65 = por %p63, %p64
      %p66 = scmp.le.s32.totalorder 1, %s11
      %p67 = scmp.lt.s32.totalorder %s11, 3
      %p68 = pnand %p66, %p67
      %p69 = pneg %p68
      // Predicated region
      $region9: #{tpu_custom_call.1} parent=5 // pred_check
        _
      $region10: #{tpu_custom_call.1} parent=5 // pred_check_branch
        %71 = sbr.rel (%p68) target = $region12
      $region11: #{tpu_custom_call.1} parent=5 // pred_region
        %s72 = ssub.s32 %s11, 1
        // Predicated region
        $region13: #{tpu_custom_call.1} parent=11 // pred_check
          %p73 = pneg %p32
        $region14: #{tpu_custom_call.1} parent=11 // pred_check_branch
          %75 = sbr.rel (%p73) target = $region16
        $region15: #{tpu_custom_call.1} parent=11 // pred_region
          %s77 = ssub.s32 128, 128
          %78 = vsyncadd [#allocation3], %s77
          %s80 = sshll.u32 [#allocation2], 4
          %s81 = int_to_ptr.vmem [resolvable:$true] %s80
          %83 = dma.hbm_to_vmem [thread:$0]  %s0, 128, %s81, [#allocation3]
        $region16: #{tpu_custom_call.1} parent=11 // pred_fallthru
          _
      $region12: #{tpu_custom_call.1} parent=5 // pred_fallthru
        _
      %p84 = scmp.lt.s32.totalorder %s11, 2
      // Predicated region
      $region17: #{tpu_custom_call.1} parent=5 // pred_check
        %p85 = pneg %p84
      $region18: #{tpu_custom_call.1} parent=5 // pred_check_branch
        %87 = sbr.rel (%p85) target = $region20
      $region19: #{tpu_custom_call.1} parent=5 // pred_region
        _
      $region20: #{tpu_custom_call.1} parent=5 // pred_fallthru
        _
      %p88 = scmp.le.s32.totalorder 1, %s11
      %p89 = scmp.lt.s32.totalorder %s11, 3
      %p90 = pnand %p88, %p89
      %p91 = pneg %p90
      // Predicated region
      $region21: #{tpu_custom_call.1} parent=5 // pred_check
        _
      $region22: #{tpu_custom_call.1} parent=5 // pred_check_branch
        %93 = sbr.rel (%p90) target = $region24
      $region23: #{tpu_custom_call.1} parent=5 // pred_region
        %s94 = ssub.s32 %s11, 1
        // Predicated region
        $region25: #{tpu_custom_call.1} parent=23 // pred_check
          %p95 = pneg %p32
        $region26: #{tpu_custom_call.1} parent=23 // pred_check_branch
          %97 = sbr.rel (%p95) target = $region28
        $region27: #{tpu_custom_call.1} parent=23 // pred_region
          %98 = dma.done [#allocation3], 128
        $region28: #{tpu_custom_call.1} parent=23 // pred_fallthru
          _
        %p99 = pneg %p32
        %p100 = pneg %p29
        %p101 = pneg %p58
        %p102 = pneg %p55
        %s103 = sand.u32 %s45, 1
        %s104 = scalar_lea.sflag [#allocation4], %s103
        %s105 = sand.u32 %s45, 1
        %s106 = smul.addr %s105, 8
        %s107 = scalar_lea.vmem [#allocation5], %s106
        %v108 = vld [vmem:[#allocation2] sm:$0xff]
        %v109 = vadd.f32 %v108, 1.0
        %110 = vst [vmem:[%s107] sm:$0xff] %v109
        %s111 = sand.u32 %s45, 1
        %s112 = scalar_lea.sflag [#allocation4], %s111
        %s113 = sand.u32 %s45, 1
        %s114 = smul.addr %s113, 8
        %s115 = scalar_lea.vmem [#allocation5], %s114
        // Predicated region
        $region29: #{tpu_custom_call.1} parent=23 // pred_check
          %p116 = pneg %p55
        $region30: #{tpu_custom_call.1} parent=23 // pred_check_branch
          %118 = sbr.rel (%p116) target = $region32
        $region31: #{tpu_custom_call.1} parent=23 // pred_region
          %s120 = ssub.s32 128, 128
          %121 = vsyncadd %s112, %s120
          %s122 = smul.addr %s16, 128
          %s123 = scalar_lea.hbm %s1, %s122
          %s125 = sshll.u32 %s115, 4
          %s126 = int_to_ptr.vmem [resolvable:$true] %s125
          %128 = dma.vmem_to_hbm [thread:$0]  %s126, 128, %s123, %s112
        $region32: #{tpu_custom_call.1} parent=23 // pred_fallthru
          _
      $region24: #{tpu_custom_call.1} parent=5 // pred_fallthru
        _
      %p129 = scmp.le.s32.totalorder 2, %s11
      // Predicated region
      $region33: #{tpu_custom_call.1} parent=5 // pred_check
        %p130 = pneg %p129
      $region34: #{tpu_custom_call.1} parent=5 // pred_check_branch
        %132 = sbr.rel (%p130) target = $region36
      $region35: #{tpu_custom_call.1} parent=5 // pred_region
        %s133 = ssub.s32 %s11, 2
        // Predicated region
        $region37: #{tpu_custom_call.1} parent=35 // pred_check
          %p134 = pneg %p61
        $region38: #{tpu_custom_call.1} parent=35 // pred_check_branch
          %136 = sbr.rel (%p134) target = $region40
        $region39: #{tpu_custom_call.1} parent=35 // pred_region
          %s137 = sand.u32 %s46, 1
          %s138 = scalar_lea.sflag [#allocation4], %s137
          %s139 = sand.u32 %s46, 1
          %s140 = smul.addr %s139, 8
          %s141 = scalar_lea.vmem [#allocation5], %s140
          %142 = dma.done %s138, 128
        $region40: #{tpu_custom_call.1} parent=35 // pred_fallthru
          _
      $region36: #{tpu_custom_call.1} parent=5 // pred_fallthru
        _
    $region6: #{tpu_custom_call.1} parent=1 // loop_footer
      %s15 = sadd.s32 1, %s11
    $region7: #{tpu_custom_call.1} parent=1 // loop_footer_branch
      %10 = sbr.rel target = $region3
    $region8: #{tpu_custom_call.1} parent=1 // loop_exit
      _
    %143 = vsyncpa [#allocation3], 1
    %s144 = scalar_lea.sflag [#allocation3], 1
    %145 = vsyncpa %s144, 1
    %146 = vsyncpa [#allocation4], 1
    %s147 = scalar_lea.sflag [#allocation4], 1
    %148 = vsyncpa %s147, 1

// kernel: tpu_custom_call.1
$region0: #{tpu_custom_call.1}
  #allocation0 [shape = 'u32[]', space=smem, size = 0x4, offset = 0x4, fixed_abs, tag = 'smem constant byte address 0x4 - core index']
  #allocation1 [shape = 'u32[144,128]{1,0:T(1,128)}', space=vmem, size = 0x12000, scoped, tag = 'internal scratch']
  %s0 = inlined_call_operand.vmem [shape: f32[2,4,16], index: 0, kind: input, shape index: {}]
  %s1 = inlined_call_operand.vmem [shape: f32[8,4], index: 1, kind: input, shape index: {}]
  %s2 = inlined_call_operand.vmem [shape: f32[8,1], index: 2, kind: input, shape index: {}]
  %s3 = inlined_call_operand.vmem [shape: f32[4,8], index: 3, kind: input, shape index: {}]
  %s4 = inlined_call_operand.vmem [shape: f32[4,1], index: 4, kind: input, shape index: {}]
  %s5 = inlined_call_operand.hbm [shape: f32[2,4,16], index: 5, kind: output, shape index: {}]
  %s6 = sld [smem:[#allocation0]]
  $region53: #{tpu_custom_call.1} parent=0
    _
  %s8 = ssub.s32 1, %s6
  %s9 = scalar_select 0, %s8, %s6
  $region1: #{tpu_custom_call.1} parent=0
    #allocation2 [shape = 'u8[4096]{0}', space=vmem, size = 0x1000, scoped, tag = 'output window, operand 0']
    #allocation3 [shape = 's32[2]{0}', space=sflag, size = 0x8, scoped, tag = 'scoped memory for tpu_custom_call.1']
    %10 = vsyncpa [#allocation3], 0
    %s11 = scalar_lea.sflag [#allocation3], 1
    %12 = vsyncpa %s11, 0
    loop: start=0, step=1, limit=4
    $region2: #{tpu_custom_call.1} parent=1 // loop_pre_header
      _
    $region3: #{tpu_custom_call.1} parent=1 // loop_header
      %s14 = sphi 0, %s18
      %p15 = scmp.ge.s32.totalorder %s14, 4
      %s24 = sphi 0, %s26
      %s27 = sphi 0, %s24
      %s28 = sphi 0, %s27
      %s44 = sphi 0, %s28
      %s48 = sphi 0, %s48
      %s50 = sphi 0, %s48
      %s51 = sphi 0, %s50
      %s65 = sphi 0, %s51
      %s69 = sphi 0, %s69
      %s71 = sphi 0, %s69
      %s72 = sphi 0, %s71
      %s86 = sphi 0, %s72
      %s90 = sphi 0, %s90
      %s92 = sphi 0, %s90
      %s93 = sphi 0, %s92
      %s107 = sphi 0, %s93
      %s111 = sphi 0, %s111
      %s113 = sphi 0, %s111
      %s114 = sphi 0, %s113
      %s128 = sphi 0, %s114
      %s134 = sphi 0, %s136
      %s137 = sphi 0, %s134
      %s138 = sphi 0, %s137
      %s154 = sphi 0, %s138
    $region4: #{tpu_custom_call.1} parent=1 // loop_header_branch
      %17 = sbr.rel (%p15) target = $region8
    $region5: #{tpu_custom_call.1} parent=1 // loop_body
      %s19 = ssub.s32 %s14, 1
      %s20 = ssub.s32 %s14, 2
      %s21 = sadd.s32 %s14, 1
      %s22 = ssub.s32 %s14, %s21
      %p23 = scmp.eq.s32.totalorder %s22, 0
      %s25 = sadd.s32 %s24, 1
      %s26 = scalar_select %p23, %s24, %s25
      %p29 = pneg %p23
      %p30 = scmp.eq.s32.totalorder %s14, 1
      %p31 = por %p29, %p30
      %p32 = scmp.ne.s32.totalorder %s24, %s27
      %p33 = scmp.eq.s32.totalorder %s14, 0
      %p34 = por %p32, %p33
      %p35 = scmp.ne.s32.totalorder %s24, %s27
      %p36 = scmp.eq.s32.totalorder %s19, 1
      %p37 = por %p35, %p36
      %p38 = scmp.ne.s32.totalorder %s27, %s28
      %p39 = scmp.eq.s32.totalorder %s19, 0
      %p40 = por %p38, %p39
      %p41 = scmp.ne.s32.totalorder %s27, %s28
      %p42 = scmp.eq.s32.totalorder %s20, 1
      %p43 = por %p41, %p42
      %p45 = scmp.ne.s32.totalorder %s28, %s44
      %p46 = scmp.eq.s32.totalorder %s20, 0
      %p47 = por %p45, %p46
      %s49 = sadd.s32 %s48, 1
      %p52 = scmp.eq.s32.totalorder %s14, 1
      %p53 = scmp.ne.s32.totalorder %s48, %s50
      %p54 = scmp.eq.s32.totalorder %s14, 0
      %p55 = por %p53, %p54
      %p56 = scmp.ne.s32.totalorder %s48, %s50
      %p57 = scmp.eq.s32.totalorder %s19, 1
      %p58 = por %p56, %p57
      %p59 = scmp.ne.s32.totalorder %s50, %s51
      %p60 = scmp.eq.s32.totalorder %s19, 0
      %p61 = por %p59, %p60
      %p62 = scmp.ne.s32.totalorder %s50, %s51
      %p63 = scmp.eq.s32.totalorder %s20, 1
      %p64 = por %p62, %p63
      %p66 = scmp.ne.s32.totalorder %s51, %s65
      %p67 = scmp.eq.s32.totalorder %s20, 0
      %p68 = por %p66, %p67
      %s70 = sadd.s32 %s69, 1
      %p73 = scmp.eq.s32.totalorder %s14, 1
      %p74 = scmp.ne.s32.totalorder %s69, %s71
      %p75 = scmp.eq.s32.totalorder %s14, 0
      %p76 = por %p74, %p75
      %p77 = scmp.ne.s32.totalorder %s69, %s71
      %p78 = scmp.eq.s32.totalorder %s19, 1
      %p79 = por %p77, %p78
      %p80 = scmp.ne.s32.totalorder %s71, %s72
      %p81 = scmp.eq.s32.totalorder %s19, 0
      %p82 = por %p80, %p81
      %p83 = scmp.ne.s32.totalorder %s71, %s72
      %p84 = scmp.eq.s32.totalorder %s20, 1
      %p85 = por %p83, %p84
      %p87 = scmp.ne.s32.totalorder %s72, %s86
      %p88 = scmp.eq.s32.totalorder %s20, 0
      %p89 = por %p87, %p88
      %s91 = sadd.s32 %s90, 1
      %p94 = scmp.eq.s32.totalorder %s14, 1
      %p95 = scmp.ne.s32.totalorder %s90, %s92
      %p96 = scmp.eq.s32.totalorder %s14, 0
      %p97 = por %p95, %p96
      %p98 = scmp.ne.s32.totalorder %s90, %s92
      %p99 = scmp.eq.s32.totalorder %s19, 1
      %p100 = por %p98, %p99
      %p101 = scmp.ne.s32.totalorder %s92, %s93
      %p102 = scmp.eq.s32.totalorder %s19, 0
      %p103 = por %p101, %p102
      %p104 = scmp.ne.s32.totalorder %s92, %s93
      %p105 = scmp.eq.s32.totalorder %s20, 1
      %p106 = por %p104, %p105
      %p108 = scmp.ne.s32.totalorder %s93, %s107
      %p109 = scmp.eq.s32.totalorder %s20, 0
      %p110 = por %p108, %p109
      %s112 = sadd.s32 %s111, 1
      %p115 = scmp.eq.s32.totalorder %s14, 1
      %p116 = scmp.ne.s32.totalorder %s111, %s113
      %p117 = scmp.eq.s32.totalorder %s14, 0
      %p118 = por %p116, %p117
      %p119 = scmp.ne.s32.totalorder %s111, %s113
      %p120 = scmp.eq.s32.totalorder %s19, 1
      %p121 = por %p119, %p120
      %p122 = scmp.ne.s32.totalorder %s113, %s114
      %p123 = scmp.eq.s32.totalorder %s19, 0
      %p124 = por %p122, %p123
      %p125 = scmp.ne.s32.totalorder %s113, %s114
      %p126 = scmp.eq.s32.totalorder %s20, 1
      %p127 = por %p125, %p126
      %p129 = scmp.ne.s32.totalorder %s114, %s128
      %p130 = scmp.eq.s32.totalorder %s20, 0
      %p131 = por %p129, %p130
      %s132 = ssub.s32 %s14, %s21
      %p133 = scmp.eq.s32.totalorder %s132, 0
      %s135 = sadd.s32 %s134, 1
      %s136 = scalar_select %p133, %s134, %s135
      %p139 = pneg %p133
      %p140 = scmp.eq.s32.totalorder %s14, 1
      %p141 = por %p139, %p140
      %p142 = scmp.ne.s32.totalorder %s134, %s137
      %p143 = scmp.eq.s32.totalorder %s14, 0
      %p144 = por %p142, %p143
      %p145 = scmp.ne.s32.totalorder %s134, %s137
      %p146 = scmp.eq.s32.totalorder %s19, 1
      %p147 = por %p145, %p146
      %p148 = scmp.ne.s32.totalorder %s137, %s138
      %p149 = scmp.eq.s32.totalorder %s19, 0
      %p150 = por %p148, %p149
      %p151 = scmp.ne.s32.totalorder %s137, %s138
      %p152 = scmp.eq.s32.totalorder %s20, 1
      %p153 = por %p151, %p152
      %p155 = scmp.ne.s32.totalorder %s138, %s154
      %p156 = scmp.eq.s32.totalorder %s20, 0
      %p157 = por %p155, %p156
      %p158 = scmp.le.s32.totalorder 1, %s14
      %p159 = scmp.lt.s32.totalorder %s14, 3
      %p160 = pnand %p158, %p159
      %p161 = pneg %p160
      // Predicated region
      $region9: #{tpu_custom_call.1} parent=5 // pred_check
        _
      $region10: #{tpu_custom_call.1} parent=5 // pred_check_branch
        %163 = sbr.rel (%p160) target = $region12
      $region11: #{tpu_custom_call.1} parent=5 // pred_region
        %s164 = ssub.s32 %s14, 1
        // Predicated region
        $region13: #{tpu_custom_call.1} parent=11 // pred_check
          %p165 = pneg %p61
        $region14: #{tpu_custom_call.1} parent=11 // pred_check_branch
          %167 = sbr.rel (%p165) target = $region16
        $region15: #{tpu_custom_call.1} parent=11 // pred_region
          _
        $region16: #{tpu_custom_call.1} parent=11 // pred_fallthru
          _
        // Predicated region
        $region17: #{tpu_custom_call.1} parent=11 // pred_check
          %p168 = pneg %p82
        $region18: #{tpu_custom_call.1} parent=11 // pred_check_branch
          %170 = sbr.rel (%p168) target = $region20
        $region19: #{tpu_custom_call.1} parent=11 // pred_region
          _
        $region20: #{tpu_custom_call.1} parent=11 // pred_fallthru
          _
        // Predicated region
        $region21: #{tpu_custom_call.1} parent=11 // pred_check
          %p171 = pneg %p103
        $region22: #{tpu_custom_call.1} parent=11 // pred_check_branch
          %173 = sbr.rel (%p171) target = $region24
        $region23: #{tpu_custom_call.1} parent=11 // pred_region
          _
        $region24: #{tpu_custom_call.1} parent=11 // pred_fallthru
          _
        // Predicated region
        $region25: #{tpu_custom_call.1} parent=11 // pred_check
          %p174 = pneg %p124
        $region26: #{tpu_custom_call.1} parent=11 // pred_check_branch
          %176 = sbr.rel (%p174) target = $region28
        $region27: #{tpu_custom_call.1} parent=11 // pred_region
          _
        $region28: #{tpu_custom_call.1} parent=11 // pred_fallthru
          _
      $region12: #{tpu_custom_call.1} parent=5 // pred_fallthru
        _
      %p177 = scmp.lt.s32.totalorder %s14, 2
      // Predicated region
      $region29: #{tpu_custom_call.1} parent=5 // pred_check
        %p178 = pneg %p177
      $region30: #{tpu_custom_call.1} parent=5 // pred_check_branch
        %180 = sbr.rel (%p178) target = $region32
      $region31: #{tpu_custom_call.1} parent=5 // pred_region
        // Predicated region
        $region33: #{tpu_custom_call.1} parent=31 // pred_check
          %p181 = pneg %p34
        $region34: #{tpu_custom_call.1} parent=31 // pred_check_branch
          %183 = sbr.rel (%p181) target = $region36
        $region35: #{tpu_custom_call.1} parent=31 // pred_region
          %p184 = scmp.lt.s32.totalorder %s14, 1
          %s185 = scalar_select %p184, %s14, 1
          %s186 = smul.addr %s185, 4
          %s187 = scalar_lea.vmem %s0, %s186
        $region36: #{tpu_custom_call.1} parent=31 // pred_fallthru
          _
      $region32: #{tpu_custom_call.1} parent=5 // pred_fallthru
        _
      %p188 = scmp.le.s32.totalorder 1, %s14
      %p189 = scmp.lt.s32.totalorder %s14, 3
      %p190 = pnand %p188, %p189
      %p191 = pneg %p190
      // Predicated region
      $region37: #{tpu_custom_call.1} parent=5 // pred_check
        _
      $region38: #{tpu_custom_call.1} parent=5 // pred_check_branch
        %193 = sbr.rel (%p190) target = $region40
      $region39: #{tpu_custom_call.1} parent=5 // pred_region
        %s194 = ssub.s32 %s14, 1
        %p195 = scmp.lt.s32.totalorder %s19, 1
        %s196 = scalar_select %p195, %s19, 1
        %s197 = smul.addr %s196, 4
        %s198 = scalar_lea.vmem %s0, %s197
        %p199 = pneg %p40
        %p200 = pneg %p37
        %p201 = pneg %p61
        %p202 = pneg %p58
        %p203 = pneg %p82
        %p204 = pneg %p79
        %p205 = pneg %p103
        %p206 = pneg %p100
        %p207 = pneg %p124
        %p208 = pneg %p121
        %p209 = pneg %p150
        %p210 = pneg %p147
        %s211 = sand.u32 %s137, 1
        %s212 = scalar_lea.sflag [#allocation3], %s211
        %s213 = sand.u32 %s137, 1
        %s214 = smul.addr %s213, 4
        %s215 = scalar_lea.vmem [#allocation2], %s214
        %p216 = scmp.lt.s32.totalorder %s19, 1
        %s217 = scalar_select %p216, %s19, 1
        %s218 = smul.addr %s217, 4
        %s219 = scalar_lea.vmem %s0, %s218
        %v220 = vld [vmem:[%s219] sm:$0xf]
        %vm221 = vcmask 125952
        %v222 = vsel %vm221, %v220, 0.0
        %223 = vadd.xlane.f32.xlu0 %v222
        %v224 = vpop.xlane.xlu0 %223
        %v225 = vrcp.pop 16.0
        %v226 = vmul.f32 %v224, %v225
        %v227 = vsel %vm221, %v220, -inf
        %228 = vmax.xlane.f32.xlu0 %v227
        %v229 = vpop.xlane.xlu0 %228
        %v230 = vlaneseq
        %v231 = vand.u32 %v230, 127
        %vm232 = vcmp.eq.s32.totalorder %v231, 0
        %v233 = vsel %vm232, %v226, %v229
        %v234 = vld [vmem:[%s1] sm:$0xff]
        %v235 = vld [vmem:[%s2] sm:$0xff]
        %v236 = vld [vmem:[%s3] sm:$0xf]
        %v237 = vld [vmem:[%s4] sm:$0xf]
        %239 = vset.pattern.permute.xlu0 0
        %240 = vperm.xlu0 %239, %v235
        %v241 = vpop.permute.xlu0 %240
        %vm243 = vcmask 31744
        %v245 = vsel %vm243, %v234, 0
        %vm247 = vcmask 1043456
        %v249 = vsel %vm247, %v233, 0
        %251 = vmatprep.subr.mxu0 0.0
        %252 = vmatpush1.msra.mxu0 %v249
        %253 = vmatprep.subr.mxu0 0.0
        %254 = vmatpush1.msra.mxu0 0.0
        %255 = vmatprep.subr.mxu0 0.0
        %256 = vmatpush1.msra.mxu0 0.0
        %257 = vmatprep.subr.mxu0 0.0
        %258 = vmatpush1.msra.mxu0 0.0
        %259 = vmatprep.subr.mxu0 0.0
        %260 = vmatpush1.msra.mxu0 0.0
        %261 = vmatprep.subr.mxu0 0.0
        %262 = vmatpush1.msra.mxu0 0.0
        %263 = vmatprep.subr.mxu0 0.0
        %264 = vmatpush1.msra.mxu0 0.0
        %265 = vmatprep.subr.mxu0 0.0
        %266 = vmatpush1.msra.mxu0 0.0
        %267 = vmatprep.subr.mxu0 0.0
        %268 = vmatpush1.msra.mxu0 0.0
        %269 = vmatprep.subr.mxu0 0.0
        %270 = vmatpush1.msra.mxu0 0.0
        %271 = vmatprep.subr.mxu0 0.0
        %272 = vmatpush1.msra.mxu0 0.0
        %273 = vmatprep.subr.mxu0 0.0
        %274 = vmatpush1.msra.mxu0 0.0
        %275 = vmatprep.subr.mxu0 0.0
        %276 = vmatpush1.msra.mxu0 0.0
        %277 = vmatprep.subr.mxu0 0.0
        %278 = vmatpush1.msra.mxu0 0.0
        %279 = vmatprep.subr.mxu0 0.0
        %280 = vmatpush1.msra.mxu0 0.0
        %281 = vmatprep.subr.mxu0 0.0
        %282 = vmatpush1.msra.mxu0 0.0
        %283 = vmatprep.subr.mxu0 0.0
        %284 = vmatpush1.msra.mxu0 0.0
        %285 = vmatprep.subr.mxu0 0.0
        %286 = vmatpush1.msra.mxu0 0.0
        %287 = vmatprep.subr.mxu0 0.0
        %288 = vmatpush1.msra.mxu0 0.0
        %289 = vmatprep.subr.mxu0 0.0
        %290 = vmatpush1.msra.mxu0 0.0
        %291 = vmatprep.subr.mxu0 0.0
        %292 = vmatpush1.msra.mxu0 0.0
        %293 = vmatprep.subr.mxu0 0.0
        %294 = vmatpush1.msra.mxu0 0.0
        %295 = vmatprep.subr.mxu0 0.0
        %296 = vmatpush1.msra.mxu0 0.0
        %297 = vmatprep.subr.mxu0 0.0
        %298 = vmatpush1.msra.mxu0 0.0
        %299 = vmatprep.subr.mxu0 0.0
        %300 = vmatpush1.msra.mxu0 0.0
        %301 = vmatprep.subr.mxu0 0.0
        %302 = vmatpush1.msra.mxu0 0.0
        %303 = vmatprep.subr.mxu0 0.0
        %304 = vmatpush1.msra.mxu0 0.0
        %305 = vmatprep.subr.mxu0 0.0
        %306 = vmatpush1.msra.mxu0 0.0
        %307 = vmatprep.subr.mxu0 0.0
        %308 = vmatpush1.msra.mxu0 0.0
        %309 = vmatprep.subr.mxu0 0.0
        %310 = vmatpush1.msra.mxu0 0.0
        %311 = vmatprep.subr.mxu0 0.0
        %312 = vmatpush1.msra.mxu0 0.0
        %313 = vmatprep.subr.mxu0 0.0
        %314 = vmatpush1.msra.mxu0 0.0
        %315 = vmatprep.mubr.f32.mxu0 0.0
        %316 = vmatmul.mubr.f32.gmra.mrb[0].mxu0 %v245
        %v317 = vpop.f32.mrb[0].mxu0
        %v318 = vadd.f32 %v241, %v317
        %v319 = vpop.f32.mrb[0].mxu0
        %320 = vdwg.mxu0
        %v321 = vmax.f32 %v318, 0.0
        %323 = vset.pattern.permute.xlu0 0
        %324 = vperm.xlu0 %323, %v237
        %v325 = vpop.permute.xlu0 %324
        %vm327 = vcmask 64512
        %v329 = vsel %vm327, %v236, 0
        %331 = vmatprep.subr.mxu0 0.0
        %332 = vmatpush1.msra.mxu0 %v321
        %333 = vmatprep.subr.mxu0 0.0
        %334 = vmatpush1.msra.mxu0 0.0
        %335 = vmatprep.subr.mxu0 0.0
        %336 = vmatpush1.msra.mxu0 0.0
        %337 = vmatprep.subr.mxu0 0.0
        %338 = vmatpush1.msra.mxu0 0.0
        %339 = vmatprep.subr.mxu0 0.0
        %340 = vmatpush1.msra.mxu0 0.0
        %341 = vmatprep.subr.mxu0 0.0
        %342 = vmatpush1.msra.mxu0 0.0
        %343 = vmatprep.subr.mxu0 0.0
        %344 = vmatpush1.msra.mxu0 0.0
        %345 = vmatprep.subr.mxu0 0.0
        %346 = vmatpush1.msra.mxu0 0.0
        %347 = vmatprep.subr.mxu0 0.0
        %348 = vmatpush1.msra.mxu0 0.0
        %349 = vmatprep.subr.mxu0 0.0
        %350 = vmatpush1.msra.mxu0 0.0
        %351 = vmatprep.subr.mxu0 0.0
        %352 = vmatpush1.msra.mxu0 0.0
        %353 = vmatprep.subr.mxu0 0.0
        %354 = vmatpush1.msra.mxu0 0.0
        %355 = vmatprep.subr.mxu0 0.0
        %356 = vmatpush1.msra.mxu0 0.0
        %357 = vmatprep.subr.mxu0 0.0
        %358 = vmatpush1.msra.mxu0 0.0
        %359 = vmatprep.subr.mxu0 0.0
        %360 = vmatpush1.msra.mxu0 0.0
        %361 = vmatprep.subr.mxu0 0.0
        %362 = vmatpush1.msra.mxu0 0.0
        %363 = vmatprep.subr.mxu0 0.0
        %364 = vmatpush1.msra.mxu0 0.0
        %365 = vmatprep.subr.mxu0 0.0
        %366 = vmatpush1.msra.mxu0 0.0
        %367 = vmatprep.subr.mxu0 0.0
        %368 = vmatpush1.msra.mxu0 0.0
        %369 = vmatprep.subr.mxu0 0.0
        %370 = vmatpush1.msra.mxu0 0.0
        %371 = vmatprep.subr.mxu0 0.0
        %372 = vmatpush1.msra.mxu0 0.0
        %373 = vmatprep.subr.mxu0 0.0
        %374 = vmatpush1.msra.mxu0 0.0
        %375 = vmatprep.subr.mxu0 0.0
        %376 = vmatpush1.msra.mxu0 0.0
        %377 = vmatprep.subr.mxu0 0.0
        %378 = vmatpush1.msra.mxu0 0.0
        %379 = vmatprep.subr.mxu0 0.0
        %380 = vmatpush1.msra.mxu0 0.0
        %381 = vmatprep.subr.mxu0 0.0
        %382 = vmatpush1.msra.mxu0 0.0
        %383 = vmatprep.subr.mxu0 0.0
        %384 = vmatpush1.msra.mxu0 0.0
        %385 = vmatprep.subr.mxu0 0.0
        %386 = vmatpush1.msra.mxu0 0.0
        %387 = vmatprep.subr.mxu0 0.0
        %388 = vmatpush1.msra.mxu0 0.0
        %389 = vmatprep.subr.mxu0 0.0
        %390 = vmatpush1.msra.mxu0 0.0
        %391 = vmatprep.subr.mxu0 0.0
        %392 = vmatpush1.msra.mxu0 0.0
        %393 = vmatprep.subr.mxu0 0.0
        %394 = vmatpush1.msra.mxu0 0.0
        %395 = vmatprep.mubr.f32.mxu0 0.0
        %396 = vmatmul.mubr.f32.gmra.mrb[0].mxu0 %v329
        %v397 = vpop.f32.mrb[0].mxu0
        %v398 = vadd.f32 %v325, %v397
        %v399 = vpop.f32.mrb[0].mxu0
        %400 = vdwg.mxu0
        %vm401 = vcmask 11264
        %v402 = vsel %vm401, %v398, -inf
        %v403 = vrot.slane %v402, 4
        %v404 = vmax.f32 %v402, %v403
        %v405 = vrot.slane %v404, 2
        %v406 = vmax.f32 %v404, %v405
        %v407 = vrot.slane %v406, 1
        %v408 = vmax.f32 %v406, %v407
        %v409 = vsub.f32 %v398, %v408
        %v410 = vmul.f32 %v409, 1.442695
        %v411 = vpow.pop %v410
        %v412 = vsel %vm401, %v411, 0.0
        %v413 = vrot.slane %v412, 4
        %v414 = vadd.f32 %v412, %v413
        %v415 = vrot.slane %v414, 2
        %v416 = vadd.f32 %v414, %v415
        %v417 = vrot.slane %v416, 1
        %v418 = vadd.f32 %v416, %v417
        %v419 = vrcp.pop %v418
        %v420 = vmul.f32 %v411, %v419
        %v421 = vsel %vm401, %v420, 0.0
        %422 = vadd.xlane.f32.xlu0 %v421
        %v423 = vpop.xlane.xlu0 %422
        %v424 = vmul.f32 %v220, %v423
        %425 = vst.msk [vmem:[%s215] sm:$0xf] %vm221, %v424
        %s426 = sand.u32 %s137, 1
        %s427 = scalar_lea.sflag [#allocation3], %s426
        %s428 = sand.u32 %s137, 1
        %s429 = smul.addr %s428, 4
        %s430 = scalar_lea.vmem [#allocation2], %s429
        // Predicated region
        $region41: #{tpu_custom_call.1} parent=39 // pred_check
          %p431 = pneg %p147
        $region42: #{tpu_custom_call.1} parent=39 // pred_check_branch
          %433 = sbr.rel (%p431) target = $region44
        $region43: #{tpu_custom_call.1} parent=39 // pred_region
          %s435 = ssub.s32 64, 64
          %436 = vsyncadd %s427, %s435
          %s437 = smul.addr %s19, 64
          %s438 = scalar_lea.hbm %s5, %s437
          %s440 = sshll.u32 %s430, 4
          %s441 = int_to_ptr.vmem [resolvable:$true] %s440
          %443 = dma.vmem_to_hbm [thread:$0]  %s441, 64, %s438, %s427
        $region44: #{tpu_custom_call.1} parent=39 // pred_fallthru
          _
      $region40: #{tpu_custom_call.1} parent=5 // pred_fallthru
        _
      %p444 = scmp.le.s32.totalorder 2, %s14
      // Predicated region
      $region45: #{tpu_custom_call.1} parent=5 // pred_check
        %p445 = pneg %p444
      $region46: #{tpu_custom_call.1} parent=5 // pred_check_branch
        %447 = sbr.rel (%p445) target = $region48
      $region47: #{tpu_custom_call.1} parent=5 // pred_region
        %s448 = ssub.s32 %s14, 2
        // Predicated region
        $region49: #{tpu_custom_call.1} parent=47 // pred_check
          %p449 = pneg %p153
        $region50: #{tpu_custom_call.1} parent=47 // pred_check_branch
          %451 = sbr.rel (%p449) target = $region52
        $region51: #{tpu_custom_call.1} parent=47 // pred_region
          %s452 = sand.u32 %s138, 1
          %s453 = scalar_lea.sflag [#allocation3], %s452
          %s454 = sand.u32 %s138, 1
          %s455 = smul.addr %s454, 4
          %s456 = scalar_lea.vmem [#allocation2], %s455
          %457 = dma.done %s453, 64
        $region52: #{tpu_custom_call.1} parent=47 // pred_fallthru
          _
      $region48: #{tpu_custom_call.1} parent=5 // pred_fallthru
        _
    $region6: #{tpu_custom_call.1} parent=1 // loop_footer
      %s18 = sadd.s32 1, %s14
    $region7: #{tpu_custom_call.1} parent=1 // loop_footer_branch
      %13 = sbr.rel target = $region3
    $region8: #{tpu_custom_call.1} parent=1 // loop_exit
      _
    %458 = vsyncpa [#allocation3], 1
    %s459 = scalar_lea.sflag [#allocation3], 1
    %460 = vsyncpa %s459, 1

</llo_original>
